<compile_context>
chip_gen: v5e
topology: v5e:2x2
jax: 0.10.0
libtpu: 0.0.40
codegen_flags: <defaults>
</compile_context>

<pallas_src>
import jax
import jax.numpy as jnp
from jax.experimental import pallas as pl
from jax.experimental.pallas import tpu as pltpu

# ---- problem sizes (small, but lane-friendly) ----
B = 8          # batch
DIM_IN = 64    # ResBlock dim_in
DIM_OUT = 128  # ResBlock dim_out
N_COND = 1000  # embedding dictionary size (default n_cond)
EPS = 1e-5     # torch.nn.LayerNorm default eps


def _silu(x):
    return x * jax.nn.sigmoid(x)


def resblock_kernel(t_ref, x_ref, emb_hbm, wf_ref, bd_ref, wl_ref, bl_ref,
                    o_ref, emb_buf, sem):
    # --- kick off the embedding-row gathers (HBM -> VMEM) first, so the DMAs
    #     overlap with the fused dense+skip matmul below ---
    for i in range(B):
        pltpu.make_async_copy(
            emb_hbm.at[pl.ds(t_ref[i], 1), :],   # [1, DIM_OUT] row t[i]
            emb_buf.at[pl.ds(i, 1), :],
            sem.at[i],
        ).start()

    # --- fused dense + skip: one [8,64]x[64,256] bf16 MXU op, f32 accumulate ---
    x = x_ref[...]                               # [B, DIM_IN] f32
    xb = x.astype(jnp.bfloat16)
    fused = jnp.dot(xb, wf_ref[...], preferred_element_type=jnp.float32)  # [B, 2*DIM_OUT]
    out = fused[:, :DIM_OUT] + bd_ref[...]       # dense(x) + bias        (lane-aligned slice)
    identity = fused[:, DIM_OUT:]                # skip(x)  (no bias)

    # --- wait for the gathered timestep embeddings ---
    for i in range(B):
        pltpu.make_async_copy(
            emb_hbm.at[pl.ds(t_ref[i], 1), :],
            emb_buf.at[pl.ds(i, 1), :],
            sem.at[i],
        ).wait()

    # --- AdaLayerNorm conditioning: linear(silu(emb)) -> scale, shift ---
    emb = emb_buf[...]                           # [B, DIM_OUT] f32
    emb_act = _silu(emb)                         # f32 element-wise (EUP/VPU)
    cond = jnp.dot(emb_act.astype(jnp.bfloat16), wl_ref[...],
                   preferred_element_type=jnp.float32) + bl_ref[...]      # [B, 2*DIM_OUT]
    scale = cond[:, :DIM_OUT]
    shift = cond[:, DIM_OUT:]

    # --- LayerNorm (no affine) over last dim, f32, two-pass for stability ---
    mean = jnp.mean(out, axis=-1, keepdims=True)
    var = jnp.mean((out - mean) ** 2, axis=-1, keepdims=True)
    normed = (out - mean) * jax.lax.rsqrt(var + EPS)

    # --- AdaLN modulation + residual + final SiLU ---
    res = normed * (1.0 + scale) + shift + identity
    o_ref[...] = _silu(res).astype(o_ref.dtype)


def resblock_forward(x, t, params):
    """x: [B, DIM_IN] f32, t: [B] int32."""
    return pl.pallas_call(
        resblock_kernel,
        out_shape=jax.ShapeDtypeStruct((B, DIM_OUT), jnp.float32),
        in_specs=[
            pl.BlockSpec(memory_space=pltpu.MemorySpace.SMEM),   # t (scalar indices)
            pl.BlockSpec(memory_space=pltpu.MemorySpace.VMEM),   # x
            pl.BlockSpec(memory_space=pl.ANY),                   # emb_table stays in HBM
            pl.BlockSpec(memory_space=pltpu.MemorySpace.VMEM),   # w_fused (bf16)
            pl.BlockSpec(memory_space=pltpu.MemorySpace.VMEM),   # b_dense
            pl.BlockSpec(memory_space=pltpu.MemorySpace.VMEM),   # w_lin   (bf16)
            pl.BlockSpec(memory_space=pltpu.MemorySpace.VMEM),   # b_lin
        ],
        out_specs=pl.BlockSpec(memory_space=pltpu.MemorySpace.VMEM),
        scratch_shapes=[
            pltpu.VMEM((B, DIM_OUT), jnp.float32),    # gathered emb rows
            pltpu.SemaphoreType.DMA((B,)),            # one DMA sem per row
        ],
        compiler_params=pltpu.CompilerParams(vmem_limit_bytes=32 * 1024 * 1024),
    )(
        t,
        x,
        params["emb_table"],   # [N_COND, DIM_OUT] f32  (HBM)
        params["w_fused"],     # [DIM_IN, 2*DIM_OUT] bf16  (dense | skip)
        params["b_dense"],     # [1, DIM_OUT] f32
        params["w_lin_t"],     # [DIM_OUT, 2*DIM_OUT] bf16
        params["b_lin"],       # [1, 2*DIM_OUT] f32
    )
    # TODO(synk): when this block is called repeatedly (per diffusion step / per layer),
    # add a grid axis with weight index_maps pinned to block (0,0) so the bf16 weights
    # stay resident in VMEM across invocations instead of being re-DMA'd every call.


def reference_forward(x, t, params):
    """Pure-JAX reference mirroring the kernel's bf16 matmul rounding."""
    w_fused = params["w_fused"].astype(jnp.float32)
    w_lin = params["w_lin_t"].astype(jnp.float32)

    xb = x.astype(jnp.bfloat16).astype(jnp.float32)
    fused = xb @ w_fused
    out = fused[:, :DIM_OUT] + params["b_dense"]
    identity = fused[:, DIM_OUT:]

    emb = params["emb_table"][t]
    emb_act = _silu(emb).astype(jnp.bfloat16).astype(jnp.float32)
    cond = emb_act @ w_lin + params["b_lin"]
    scale, shift = cond[:, :DIM_OUT], cond[:, DIM_OUT:]

    mean = out.mean(-1, keepdims=True)
    var = ((out - mean) ** 2).mean(-1, keepdims=True)
    normed = (out - mean) / jnp.sqrt(var + EPS)
    out = normed * (1.0 + scale) + shift + identity
    return _silu(out)


def init_params(key):
    ks = jax.random.split(key, 6)
    s_in = 1.0 / DIM_IN ** 0.5
    s_out = 1.0 / DIM_OUT ** 0.5
    w_dense = jax.random.uniform(ks[1], (DIM_IN, DIM_OUT), jnp.float32, -s_in, s_in)
    w_skip = jax.random.uniform(ks[5], (DIM_IN, DIM_OUT), jnp.float32, -s_in, s_in)
    # Fuse dense+skip weights once at init; store matmul weights as bf16.
    w_fused = jnp.concatenate([w_dense, w_skip], axis=1).astype(jnp.bfloat16)
    return {
        "emb_table": jax.random.normal(ks[0], (N_COND, DIM_OUT), jnp.float32),
        "w_fused": w_fused,                                                   # [64, 256] bf16
        "b_dense": jax.random.uniform(ks[2], (1, DIM_OUT), jnp.float32, -s_in, s_in),
        "w_lin_t": jax.random.uniform(ks[3], (DIM_OUT, 2 * DIM_OUT), jnp.float32,
                                      -s_out, s_out).astype(jnp.bfloat16),    # [128, 256] bf16
        "b_lin": jax.random.uniform(ks[4], (1, 2 * DIM_OUT), jnp.float32, -s_out, s_out),
    }


if __name__ == "__main__":
    key = jax.random.PRNGKey(0)
    kx, kt, kp = jax.random.split(key, 3)
    x = jax.random.normal(kx, (B, DIM_IN), jnp.float32)
    t = jax.random.randint(kt, (B,), 0, N_COND, jnp.int32)
    params = init_params(kp)

    out = jax.block_until_ready(resblock_forward(x, t, params))
    ref = reference_forward(x, t, params)

    assert out.shape == (B, DIM_OUT)
    assert jnp.allclose(out, ref, atol=2e-3, rtol=2e-3), \
        f"max err {jnp.max(jnp.abs(out - ref))}"
    print("KERNEL_OK")
</pallas_src>

<mosaic_0001>
module attributes {stable_mosaic.version = 11 : i64} {
  func.func @resblock_kernel(%arg0: memref<8xi32, #tpu.memory_space<smem>>, %arg1: memref<8x64xf32, #tpu.memory_space<vmem>>, %arg2: memref<1000x128xf32, #tpu.memory_space<any>>, %arg3: memref<64x256xbf16, #tpu.memory_space<vmem>>, %arg4: memref<1x128xf32, #tpu.memory_space<vmem>>, %arg5: memref<128x256xbf16, #tpu.memory_space<vmem>>, %arg6: memref<1x256xf32, #tpu.memory_space<vmem>>, %arg7: memref<8x128xf32, #tpu.memory_space<vmem>>, %arg8: memref<8x128xf32, #tpu.memory_space<vmem>>, %arg9: memref<8x!tpu.dma_semaphore, #tpu.memory_space<semaphore_mem>>) attributes {dimension_semantics = [], scalar_prefetch = 0 : i64, scratch_operands = 2 : i64, tpu.core_type = #tpu.core_type<tc>} {
    %c0 = arith.constant 0 : index
    %0 = memref.load %arg0[%c0] : memref<8xi32, #tpu.memory_space<smem>>
    %c0_i32 = arith.constant 0 : i32
    %c0_i32_0 = arith.constant 0 : i32
    %1 = tpu.memref_slice %arg2[%0, %c0_i32_0] : memref<1000x128xf32, #tpu.memory_space<any>> -> memref<1x128xf32, #tpu.memory_space<any>>
    %c0_i32_1 = arith.constant 0 : i32
    %c0_i32_2 = arith.constant 0 : i32
    %2 = tpu.memref_slice %arg8[%c0_i32_1, %c0_i32_2] : memref<8x128xf32, #tpu.memory_space<vmem>> -> memref<1x128xf32, #tpu.memory_space<vmem>>
    %3 = tpu.memref_slice %arg9[%c0_i32] : memref<8x!tpu.dma_semaphore, #tpu.memory_space<semaphore_mem>> -> memref<1x!tpu.dma_semaphore, #tpu.memory_space<semaphore_mem>>
    %4 = tpu.memref_squeeze %3 : memref<1x!tpu.dma_semaphore, #tpu.memory_space<semaphore_mem>> -> memref<!tpu.dma_semaphore, #tpu.memory_space<semaphore_mem>>
    tpu.enqueue_dma source(%1 : memref<1x128xf32, #tpu.memory_space<any>>) target(%2 : memref<1x128xf32, #tpu.memory_space<vmem>>) target_semaphore(%4 : memref<!tpu.dma_semaphore, #tpu.memory_space<semaphore_mem>>)
    %c1 = arith.constant 1 : index
    %5 = memref.load %arg0[%c1] : memref<8xi32, #tpu.memory_space<smem>>
    %c1_i32 = arith.constant 1 : i32
    %c0_i32_3 = arith.constant 0 : i32
    %6 = tpu.memref_slice %arg2[%5, %c0_i32_3] : memref<1000x128xf32, #tpu.memory_space<any>> -> memref<1x128xf32, #tpu.memory_space<any>>
    %c1_i32_4 = arith.constant 1 : i32
    %c0_i32_5 = arith.constant 0 : i32
    %7 = tpu.memref_slice %arg8[%c1_i32_4, %c0_i32_5] : memref<8x128xf32, #tpu.memory_space<vmem>> -> memref<1x128xf32, #tpu.memory_space<vmem>>
    %8 = tpu.memref_slice %arg9[%c1_i32] : memref<8x!tpu.dma_semaphore, #tpu.memory_space<semaphore_mem>> -> memref<1x!tpu.dma_semaphore, #tpu.memory_space<semaphore_mem>>
    %9 = tpu.memref_squeeze %8 : memref<1x!tpu.dma_semaphore, #tpu.memory_space<semaphore_mem>> -> memref<!tpu.dma_semaphore, #tpu.memory_space<semaphore_mem>>
    tpu.enqueue_dma source(%6 : memref<1x128xf32, #tpu.memory_space<any>>) target(%7 : memref<1x128xf32, #tpu.memory_space<vmem>>) target_semaphore(%9 : memref<!tpu.dma_semaphore, #tpu.memory_space<semaphore_mem>>)
    %c2 = arith.constant 2 : index
    %10 = memref.load %arg0[%c2] : memref<8xi32, #tpu.memory_space<smem>>
    %c2_i32 = arith.constant 2 : i32
    %c0_i32_6 = arith.constant 0 : i32
    %11 = tpu.memref_slice %arg2[%10, %c0_i32_6] : memref<1000x128xf32, #tpu.memory_space<any>> -> memref<1x128xf32, #tpu.memory_space<any>>
    %c2_i32_7 = arith.constant 2 : i32
    %c0_i32_8 = arith.constant 0 : i32
    %12 = tpu.memref_slice %arg8[%c2_i32_7, %c0_i32_8] : memref<8x128xf32, #tpu.memory_space<vmem>> -> memref<1x128xf32, #tpu.memory_space<vmem>>
    %13 = tpu.memref_slice %arg9[%c2_i32] : memref<8x!tpu.dma_semaphore, #tpu.memory_space<semaphore_mem>> -> memref<1x!tpu.dma_semaphore, #tpu.memory_space<semaphore_mem>>
    %14 = tpu.memref_squeeze %13 : memref<1x!tpu.dma_semaphore, #tpu.memory_space<semaphore_mem>> -> memref<!tpu.dma_semaphore, #tpu.memory_space<semaphore_mem>>
    tpu.enqueue_dma source(%11 : memref<1x128xf32, #tpu.memory_space<any>>) target(%12 : memref<1x128xf32, #tpu.memory_space<vmem>>) target_semaphore(%14 : memref<!tpu.dma_semaphore, #tpu.memory_space<semaphore_mem>>)
    %c3 = arith.constant 3 : index
    %15 = memref.load %arg0[%c3] : memref<8xi32, #tpu.memory_space<smem>>
    %c3_i32 = arith.constant 3 : i32
    %c0_i32_9 = arith.constant 0 : i32
    %16 = tpu.memref_slice %arg2[%15, %c0_i32_9] : memref<1000x128xf32, #tpu.memory_space<any>> -> memref<1x128xf32, #tpu.memory_space<any>>
    %c3_i32_10 = arith.constant 3 : i32
    %c0_i32_11 = arith.constant 0 : i32
    %17 = tpu.memref_slice %arg8[%c3_i32_10, %c0_i32_11] : memref<8x128xf32, #tpu.memory_space<vmem>> -> memref<1x128xf32, #tpu.memory_space<vmem>>
    %18 = tpu.memref_slice %arg9[%c3_i32] : memref<8x!tpu.dma_semaphore, #tpu.memory_space<semaphore_mem>> -> memref<1x!tpu.dma_semaphore, #tpu.memory_space<semaphore_mem>>
    %19 = tpu.memref_squeeze %18 : memref<1x!tpu.dma_semaphore, #tpu.memory_space<semaphore_mem>> -> memref<!tpu.dma_semaphore, #tpu.memory_space<semaphore_mem>>
    tpu.enqueue_dma source(%16 : memref<1x128xf32, #tpu.memory_space<any>>) target(%17 : memref<1x128xf32, #tpu.memory_space<vmem>>) target_semaphore(%19 : memref<!tpu.dma_semaphore, #tpu.memory_space<semaphore_mem>>)
    %c4 = arith.constant 4 : index
    %20 = memref.load %arg0[%c4] : memref<8xi32, #tpu.memory_space<smem>>
    %c4_i32 = arith.constant 4 : i32
    %c0_i32_12 = arith.constant 0 : i32
    %21 = tpu.memref_slice %arg2[%20, %c0_i32_12] : memref<1000x128xf32, #tpu.memory_space<any>> -> memref<1x128xf32, #tpu.memory_space<any>>
    %c4_i32_13 = arith.constant 4 : i32
    %c0_i32_14 = arith.constant 0 : i32
    %22 = tpu.memref_slice %arg8[%c4_i32_13, %c0_i32_14] : memref<8x128xf32, #tpu.memory_space<vmem>> -> memref<1x128xf32, #tpu.memory_space<vmem>>
    %23 = tpu.memref_slice %arg9[%c4_i32] : memref<8x!tpu.dma_semaphore, #tpu.memory_space<semaphore_mem>> -> memref<1x!tpu.dma_semaphore, #tpu.memory_space<semaphore_mem>>
    %24 = tpu.memref_squeeze %23 : memref<1x!tpu.dma_semaphore, #tpu.memory_space<semaphore_mem>> -> memref<!tpu.dma_semaphore, #tpu.memory_space<semaphore_mem>>
    tpu.enqueue_dma source(%21 : memref<1x128xf32, #tpu.memory_space<any>>) target(%22 : memref<1x128xf32, #tpu.memory_space<vmem>>) target_semaphore(%24 : memref<!tpu.dma_semaphore, #tpu.memory_space<semaphore_mem>>)
    %c5 = arith.constant 5 : index
    %25 = memref.load %arg0[%c5] : memref<8xi32, #tpu.memory_space<smem>>
    %c5_i32 = arith.constant 5 : i32
    %c0_i32_15 = arith.constant 0 : i32
    %26 = tpu.memref_slice %arg2[%25, %c0_i32_15] : memref<1000x128xf32, #tpu.memory_space<any>> -> memref<1x128xf32, #tpu.memory_space<any>>
    %c5_i32_16 = arith.constant 5 : i32
    %c0_i32_17 = arith.constant 0 : i32
    %27 = tpu.memref_slice %arg8[%c5_i32_16, %c0_i32_17] : memref<8x128xf32, #tpu.memory_space<vmem>> -> memref<1x128xf32, #tpu.memory_space<vmem>>
    %28 = tpu.memref_slice %arg9[%c5_i32] : memref<8x!tpu.dma_semaphore, #tpu.memory_space<semaphore_mem>> -> memref<1x!tpu.dma_semaphore, #tpu.memory_space<semaphore_mem>>
    %29 = tpu.memref_squeeze %28 : memref<1x!tpu.dma_semaphore, #tpu.memory_space<semaphore_mem>> -> memref<!tpu.dma_semaphore, #tpu.memory_space<semaphore_mem>>
    tpu.enqueue_dma source(%26 : memref<1x128xf32, #tpu.memory_space<any>>) target(%27 : memref<1x128xf32, #tpu.memory_space<vmem>>) target_semaphore(%29 : memref<!tpu.dma_semaphore, #tpu.memory_space<semaphore_mem>>)
    %c6 = arith.constant 6 : index
    %30 = memref.load %arg0[%c6] : memref<8xi32, #tpu.memory_space<smem>>
    %c6_i32 = arith.constant 6 : i32
    %c0_i32_18 = arith.constant 0 : i32
    %31 = tpu.memref_slice %arg2[%30, %c0_i32_18] : memref<1000x128xf32, #tpu.memory_space<any>> -> memref<1x128xf32, #tpu.memory_space<any>>
    %c6_i32_19 = arith.constant 6 : i32
    %c0_i32_20 = arith.constant 0 : i32
    %32 = tpu.memref_slice %arg8[%c6_i32_19, %c0_i32_20] : memref<8x128xf32, #tpu.memory_space<vmem>> -> memref<1x128xf32, #tpu.memory_space<vmem>>
    %33 = tpu.memref_slice %arg9[%c6_i32] : memref<8x!tpu.dma_semaphore, #tpu.memory_space<semaphore_mem>> -> memref<1x!tpu.dma_semaphore, #tpu.memory_space<semaphore_mem>>
    %34 = tpu.memref_squeeze %33 : memref<1x!tpu.dma_semaphore, #tpu.memory_space<semaphore_mem>> -> memref<!tpu.dma_semaphore, #tpu.memory_space<semaphore_mem>>
    tpu.enqueue_dma source(%31 : memref<1x128xf32, #tpu.memory_space<any>>) target(%32 : memref<1x128xf32, #tpu.memory_space<vmem>>) target_semaphore(%34 : memref<!tpu.dma_semaphore, #tpu.memory_space<semaphore_mem>>)
    %c7 = arith.constant 7 : index
    %35 = memref.load %arg0[%c7] : memref<8xi32, #tpu.memory_space<smem>>
    %c7_i32 = arith.constant 7 : i32
    %c0_i32_21 = arith.constant 0 : i32
    %36 = tpu.memref_slice %arg2[%35, %c0_i32_21] : memref<1000x128xf32, #tpu.memory_space<any>> -> memref<1x128xf32, #tpu.memory_space<any>>
    %c7_i32_22 = arith.constant 7 : i32
    %c0_i32_23 = arith.constant 0 : i32
    %37 = tpu.memref_slice %arg8[%c7_i32_22, %c0_i32_23] : memref<8x128xf32, #tpu.memory_space<vmem>> -> memref<1x128xf32, #tpu.memory_space<vmem>>
    %38 = tpu.memref_slice %arg9[%c7_i32] : memref<8x!tpu.dma_semaphore, #tpu.memory_space<semaphore_mem>> -> memref<1x!tpu.dma_semaphore, #tpu.memory_space<semaphore_mem>>
    %39 = tpu.memref_squeeze %38 : memref<1x!tpu.dma_semaphore, #tpu.memory_space<semaphore_mem>> -> memref<!tpu.dma_semaphore, #tpu.memory_space<semaphore_mem>>
    tpu.enqueue_dma source(%36 : memref<1x128xf32, #tpu.memory_space<any>>) target(%37 : memref<1x128xf32, #tpu.memory_space<vmem>>) target_semaphore(%39 : memref<!tpu.dma_semaphore, #tpu.memory_space<semaphore_mem>>)
    %c0_24 = arith.constant 0 : index
    %c0_25 = arith.constant 0 : index
    %40 = vector.load %arg1[%c0_24, %c0_25] : memref<8x64xf32, #tpu.memory_space<vmem>>, vector<8x64xf32>
    %41 = arith.truncf %40 : vector<8x64xf32> to vector<8x64xbf16>
    %c0_26 = arith.constant 0 : index
    %c0_27 = arith.constant 0 : index
    %42 = vector.load %arg3[%c0_26, %c0_27] : memref<64x256xbf16, #tpu.memory_space<vmem>>, vector<64x256xbf16>
    %cst = arith.constant dense<0.000000e+00> : vector<8x256xf32>
    %43 = tpu.matmul %41, %42, %cst {dimension_numbers = #tpu.dot_dimension_numbers<[1], [0], [0], [1], [0, 0, 1, 1], [], []>} : vector<8x64xbf16>, vector<64x256xbf16>, vector<8x256xf32> -> vector<8x256xf32>
    %44 = vector.extract_strided_slice %43 {offsets = [0, 0], sizes = [8, 128], strides = [1, 1]} : vector<8x256xf32> to vector<8x128xf32>
    %c0_28 = arith.constant 0 : index
    %c0_29 = arith.constant 0 : index
    %45 = vector.load %arg4[%c0_28, %c0_29] : memref<1x128xf32, #tpu.memory_space<vmem>>, vector<1x128xf32>
    %46 = vector.broadcast %45 : vector<1x128xf32> to vector<8x128xf32>
    %47 = arith.addf %44, %46 : vector<8x128xf32>
    %48 = vector.extract_strided_slice %43 {offsets = [0, 128], sizes = [8, 128], strides = [1, 1]} : vector<8x256xf32> to vector<8x128xf32>
    %c0_30 = arith.constant 0 : index
    %49 = memref.load %arg0[%c0_30] : memref<8xi32, #tpu.memory_space<smem>>
    %c0_i32_31 = arith.constant 0 : i32
    %c0_i32_32 = arith.constant 0 : i32
    %50 = tpu.memref_slice %arg2[%49, %c0_i32_32] : memref<1000x128xf32, #tpu.memory_space<any>> -> memref<1x128xf32, #tpu.memory_space<any>>
    %c0_i32_33 = arith.constant 0 : i32
    %c0_i32_34 = arith.constant 0 : i32
    %51 = tpu.memref_slice %arg8[%c0_i32_33, %c0_i32_34] : memref<8x128xf32, #tpu.memory_space<vmem>> -> memref<1x128xf32, #tpu.memory_space<vmem>>
    %52 = tpu.memref_slice %arg9[%c0_i32_31] : memref<8x!tpu.dma_semaphore, #tpu.memory_space<semaphore_mem>> -> memref<1x!tpu.dma_semaphore, #tpu.memory_space<semaphore_mem>>
    %53 = tpu.memref_squeeze %52 : memref<1x!tpu.dma_semaphore, #tpu.memory_space<semaphore_mem>> -> memref<!tpu.dma_semaphore, #tpu.memory_space<semaphore_mem>>
    tpu.wait_dma2 semaphore(%53 : memref<!tpu.dma_semaphore, #tpu.memory_space<semaphore_mem>>) src(%50 : memref<1x128xf32, #tpu.memory_space<any>>) dst(%51 : memref<1x128xf32, #tpu.memory_space<vmem>>)
    %c1_35 = arith.constant 1 : index
    %54 = memref.load %arg0[%c1_35] : memref<8xi32, #tpu.memory_space<smem>>
    %c1_i32_36 = arith.constant 1 : i32
    %c0_i32_37 = arith.constant 0 : i32
    %55 = tpu.memref_slice %arg2[%54, %c0_i32_37] : memref<1000x128xf32, #tpu.memory_space<any>> -> memref<1x128xf32, #tpu.memory_space<any>>
    %c1_i32_38 = arith.constant 1 : i32
    %c0_i32_39 = arith.constant 0 : i32
    %56 = tpu.memref_slice %arg8[%c1_i32_38, %c0_i32_39] : memref<8x128xf32, #tpu.memory_space<vmem>> -> memref<1x128xf32, #tpu.memory_space<vmem>>
    %57 = tpu.memref_slice %arg9[%c1_i32_36] : memref<8x!tpu.dma_semaphore, #tpu.memory_space<semaphore_mem>> -> memref<1x!tpu.dma_semaphore, #tpu.memory_space<semaphore_mem>>
    %58 = tpu.memref_squeeze %57 : memref<1x!tpu.dma_semaphore, #tpu.memory_space<semaphore_mem>> -> memref<!tpu.dma_semaphore, #tpu.memory_space<semaphore_mem>>
    tpu.wait_dma2 semaphore(%58 : memref<!tpu.dma_semaphore, #tpu.memory_space<semaphore_mem>>) src(%55 : memref<1x128xf32, #tpu.memory_space<any>>) dst(%56 : memref<1x128xf32, #tpu.memory_space<vmem>>)
    %c2_40 = arith.constant 2 : index
    %59 = memref.load %arg0[%c2_40] : memref<8xi32, #tpu.memory_space<smem>>
    %c2_i32_41 = arith.constant 2 : i32
    %c0_i32_42 = arith.constant 0 : i32
    %60 = tpu.memref_slice %arg2[%59, %c0_i32_42] : memref<1000x128xf32, #tpu.memory_space<any>> -> memref<1x128xf32, #tpu.memory_space<any>>
    %c2_i32_43 = arith.constant 2 : i32
    %c0_i32_44 = arith.constant 0 : i32
    %61 = tpu.memref_slice %arg8[%c2_i32_43, %c0_i32_44] : memref<8x128xf32, #tpu.memory_space<vmem>> -> memref<1x128xf32, #tpu.memory_space<vmem>>
    %62 = tpu.memref_slice %arg9[%c2_i32_41] : memref<8x!tpu.dma_semaphore, #tpu.memory_space<semaphore_mem>> -> memref<1x!tpu.dma_semaphore, #tpu.memory_space<semaphore_mem>>
    %63 = tpu.memref_squeeze %62 : memref<1x!tpu.dma_semaphore, #tpu.memory_space<semaphore_mem>> -> memref<!tpu.dma_semaphore, #tpu.memory_space<semaphore_mem>>
    tpu.wait_dma2 semaphore(%63 : memref<!tpu.dma_semaphore, #tpu.memory_space<semaphore_mem>>) src(%60 : memref<1x128xf32, #tpu.memory_space<any>>) dst(%61 : memref<1x128xf32, #tpu.memory_space<vmem>>)
    %c3_45 = arith.constant 3 : index
    %64 = memref.load %arg0[%c3_45] : memref<8xi32, #tpu.memory_space<smem>>
    %c3_i32_46 = arith.constant 3 : i32
    %c0_i32_47 = arith.constant 0 : i32
    %65 = tpu.memref_slice %arg2[%64, %c0_i32_47] : memref<1000x128xf32, #tpu.memory_space<any>> -> memref<1x128xf32, #tpu.memory_space<any>>
    %c3_i32_48 = arith.constant 3 : i32
    %c0_i32_49 = arith.constant 0 : i32
    %66 = tpu.memref_slice %arg8[%c3_i32_48, %c0_i32_49] : memref<8x128xf32, #tpu.memory_space<vmem>> -> memref<1x128xf32, #tpu.memory_space<vmem>>
    %67 = tpu.memref_slice %arg9[%c3_i32_46] : memref<8x!tpu.dma_semaphore, #tpu.memory_space<semaphore_mem>> -> memref<1x!tpu.dma_semaphore, #tpu.memory_space<semaphore_mem>>
    %68 = tpu.memref_squeeze %67 : memref<1x!tpu.dma_semaphore, #tpu.memory_space<semaphore_mem>> -> memref<!tpu.dma_semaphore, #tpu.memory_space<semaphore_mem>>
    tpu.wait_dma2 semaphore(%68 : memref<!tpu.dma_semaphore, #tpu.memory_space<semaphore_mem>>) src(%65 : memref<1x128xf32, #tpu.memory_space<any>>) dst(%66 : memref<1x128xf32, #tpu.memory_space<vmem>>)
    %c4_50 = arith.constant 4 : index
    %69 = memref.load %arg0[%c4_50] : memref<8xi32, #tpu.memory_space<smem>>
    %c4_i32_51 = arith.constant 4 : i32
    %c0_i32_52 = arith.constant 0 : i32
    %70 = tpu.memref_slice %arg2[%69, %c0_i32_52] : memref<1000x128xf32, #tpu.memory_space<any>> -> memref<1x128xf32, #tpu.memory_space<any>>
    %c4_i32_53 = arith.constant 4 : i32
    %c0_i32_54 = arith.constant 0 : i32
    %71 = tpu.memref_slice %arg8[%c4_i32_53, %c0_i32_54] : memref<8x128xf32, #tpu.memory_space<vmem>> -> memref<1x128xf32, #tpu.memory_space<vmem>>
    %72 = tpu.memref_slice %arg9[%c4_i32_51] : memref<8x!tpu.dma_semaphore, #tpu.memory_space<semaphore_mem>> -> memref<1x!tpu.dma_semaphore, #tpu.memory_space<semaphore_mem>>
    %73 = tpu.memref_squeeze %72 : memref<1x!tpu.dma_semaphore, #tpu.memory_space<semaphore_mem>> -> memref<!tpu.dma_semaphore, #tpu.memory_space<semaphore_mem>>
    tpu.wait_dma2 semaphore(%73 : memref<!tpu.dma_semaphore, #tpu.memory_space<semaphore_mem>>) src(%70 : memref<1x128xf32, #tpu.memory_space<any>>) dst(%71 : memref<1x128xf32, #tpu.memory_space<vmem>>)
    %c5_55 = arith.constant 5 : index
    %74 = memref.load %arg0[%c5_55] : memref<8xi32, #tpu.memory_space<smem>>
    %c5_i32_56 = arith.constant 5 : i32
    %c0_i32_57 = arith.constant 0 : i32
    %75 = tpu.memref_slice %arg2[%74, %c0_i32_57] : memref<1000x128xf32, #tpu.memory_space<any>> -> memref<1x128xf32, #tpu.memory_space<any>>
    %c5_i32_58 = arith.constant 5 : i32
    %c0_i32_59 = arith.constant 0 : i32
    %76 = tpu.memref_slice %arg8[%c5_i32_58, %c0_i32_59] : memref<8x128xf32, #tpu.memory_space<vmem>> -> memref<1x128xf32, #tpu.memory_space<vmem>>
    %77 = tpu.memref_slice %arg9[%c5_i32_56] : memref<8x!tpu.dma_semaphore, #tpu.memory_space<semaphore_mem>> -> memref<1x!tpu.dma_semaphore, #tpu.memory_space<semaphore_mem>>
    %78 = tpu.memref_squeeze %77 : memref<1x!tpu.dma_semaphore, #tpu.memory_space<semaphore_mem>> -> memref<!tpu.dma_semaphore, #tpu.memory_space<semaphore_mem>>
    tpu.wait_dma2 semaphore(%78 : memref<!tpu.dma_semaphore, #tpu.memory_space<semaphore_mem>>) src(%75 : memref<1x128xf32, #tpu.memory_space<any>>) dst(%76 : memref<1x128xf32, #tpu.memory_space<vmem>>)
    %c6_60 = arith.constant 6 : index
    %79 = memref.load %arg0[%c6_60] : memref<8xi32, #tpu.memory_space<smem>>
    %c6_i32_61 = arith.constant 6 : i32
    %c0_i32_62 = arith.constant 0 : i32
    %80 = tpu.memref_slice %arg2[%79, %c0_i32_62] : memref<1000x128xf32, #tpu.memory_space<any>> -> memref<1x128xf32, #tpu.memory_space<any>>
    %c6_i32_63 = arith.constant 6 : i32
    %c0_i32_64 = arith.constant 0 : i32
    %81 = tpu.memref_slice %arg8[%c6_i32_63, %c0_i32_64] : memref<8x128xf32, #tpu.memory_space<vmem>> -> memref<1x128xf32, #tpu.memory_space<vmem>>
    %82 = tpu.memref_slice %arg9[%c6_i32_61] : memref<8x!tpu.dma_semaphore, #tpu.memory_space<semaphore_mem>> -> memref<1x!tpu.dma_semaphore, #tpu.memory_space<semaphore_mem>>
    %83 = tpu.memref_squeeze %82 : memref<1x!tpu.dma_semaphore, #tpu.memory_space<semaphore_mem>> -> memref<!tpu.dma_semaphore, #tpu.memory_space<semaphore_mem>>
    tpu.wait_dma2 semaphore(%83 : memref<!tpu.dma_semaphore, #tpu.memory_space<semaphore_mem>>) src(%80 : memref<1x128xf32, #tpu.memory_space<any>>) dst(%81 : memref<1x128xf32, #tpu.memory_space<vmem>>)
    %c7_65 = arith.constant 7 : index
    %84 = memref.load %arg0[%c7_65] : memref<8xi32, #tpu.memory_space<smem>>
    %c7_i32_66 = arith.constant 7 : i32
    %c0_i32_67 = arith.constant 0 : i32
    %85 = tpu.memref_slice %arg2[%84, %c0_i32_67] : memref<1000x128xf32, #tpu.memory_space<any>> -> memref<1x128xf32, #tpu.memory_space<any>>
    %c7_i32_68 = arith.constant 7 : i32
    %c0_i32_69 = arith.constant 0 : i32
    %86 = tpu.memref_slice %arg8[%c7_i32_68, %c0_i32_69] : memref<8x128xf32, #tpu.memory_space<vmem>> -> memref<1x128xf32, #tpu.memory_space<vmem>>
    %87 = tpu.memref_slice %arg9[%c7_i32_66] : memref<8x!tpu.dma_semaphore, #tpu.memory_space<semaphore_mem>> -> memref<1x!tpu.dma_semaphore, #tpu.memory_space<semaphore_mem>>
    %88 = tpu.memref_squeeze %87 : memref<1x!tpu.dma_semaphore, #tpu.memory_space<semaphore_mem>> -> memref<!tpu.dma_semaphore, #tpu.memory_space<semaphore_mem>>
    tpu.wait_dma2 semaphore(%88 : memref<!tpu.dma_semaphore, #tpu.memory_space<semaphore_mem>>) src(%85 : memref<1x128xf32, #tpu.memory_space<any>>) dst(%86 : memref<1x128xf32, #tpu.memory_space<vmem>>)
    %c0_70 = arith.constant 0 : index
    %c0_71 = arith.constant 0 : index
    %89 = vector.load %arg8[%c0_70, %c0_71] : memref<8x128xf32, #tpu.memory_space<vmem>>, vector<8x128xf32>
    %90 = arith.negf %89 : vector<8x128xf32>
    %91 = math.exp %90 : vector<8x128xf32>
    %cst_72 = arith.constant 1.000000e+00 : f32
    %92 = vector.broadcast %cst_72 : f32 to vector<8x128xf32>
    %93 = arith.addf %92, %91 : vector<8x128xf32>
    %94 = arith.divf %92, %93 : vector<8x128xf32>
    %95 = arith.mulf %89, %94 : vector<8x128xf32>
    %96 = arith.truncf %95 : vector<8x128xf32> to vector<8x128xbf16>
    %c0_73 = arith.constant 0 : index
    %c0_74 = arith.constant 0 : index
    %97 = vector.load %arg5[%c0_73, %c0_74] : memref<128x256xbf16, #tpu.memory_space<vmem>>, vector<128x256xbf16>
    %cst_75 = arith.constant dense<0.000000e+00> : vector<8x256xf32>
    %98 = tpu.matmul %96, %97, %cst_75 {dimension_numbers = #tpu.dot_dimension_numbers<[1], [0], [0], [1], [0, 0, 1, 1], [], []>} : vector<8x128xbf16>, vector<128x256xbf16>, vector<8x256xf32> -> vector<8x256xf32>
    %c0_76 = arith.constant 0 : index
    %c0_77 = arith.constant 0 : index
    %99 = vector.load %arg6[%c0_76, %c0_77] : memref<1x256xf32, #tpu.memory_space<vmem>>, vector<1x256xf32>
    %100 = vector.broadcast %99 : vector<1x256xf32> to vector<8x256xf32>
    %101 = arith.addf %98, %100 : vector<8x256xf32>
    %102 = vector.extract_strided_slice %101 {offsets = [0, 0], sizes = [8, 128], strides = [1, 1]} : vector<8x256xf32> to vector<8x128xf32>
    %103 = vector.extract_strided_slice %101 {offsets = [0, 128], sizes = [8, 128], strides = [1, 1]} : vector<8x256xf32> to vector<8x128xf32>
    %cst_78 = arith.constant dense<0.000000e+00> : vector<8xf32>
    %104 = vector.multi_reduction <add>, %47, %cst_78 [1] : vector<8x128xf32> to vector<8xf32>
    %105 = vector.shape_cast %104 : vector<8xf32> to vector<8x1xf32>
    %cst_79 = arith.constant 1.280000e+02 : f32
    %106 = vector.broadcast %cst_79 : f32 to vector<8x1xf32>
    %107 = arith.divf %105, %106 : vector<8x1xf32>
    %108 = vector.broadcast %107 : vector<8x1xf32> to vector<8x128xf32>
    %109 = arith.subf %47, %108 : vector<8x128xf32>
    %110 = arith.mulf %109, %109 : vector<8x128xf32>
    %cst_80 = arith.constant dense<0.000000e+00> : vector<8xf32>
    %111 = vector.multi_reduction <add>, %110, %cst_80 [1] : vector<8x128xf32> to vector<8xf32>
    %112 = vector.shape_cast %111 : vector<8xf32> to vector<8x1xf32>
    %cst_81 = arith.constant 1.280000e+02 : f32
    %113 = vector.broadcast %cst_81 : f32 to vector<8x1xf32>
    %114 = arith.divf %112, %113 : vector<8x1xf32>
    %115 = vector.broadcast %107 : vector<8x1xf32> to vector<8x128xf32>
    %116 = arith.subf %47, %115 : vector<8x128xf32>
    %cst_82 = arith.constant 9.99999974E-6 : f32
    %117 = vector.broadcast %cst_82 : f32 to vector<8x1xf32>
    %118 = arith.addf %114, %117 : vector<8x1xf32>
    %119 = math.rsqrt %118 : vector<8x1xf32>
    %120 = vector.broadcast %119 : vector<8x1xf32> to vector<8x128xf32>
    %121 = arith.mulf %116, %120 : vector<8x128xf32>
    %cst_83 = arith.constant 1.000000e+00 : f32
    %122 = vector.broadcast %cst_83 : f32 to vector<8x128xf32>
    %123 = arith.addf %122, %102 : vector<8x128xf32>
    %124 = arith.mulf %121, %123 : vector<8x128xf32>
    %125 = arith.addf %124, %103 : vector<8x128xf32>
    %126 = arith.addf %125, %48 : vector<8x128xf32>
    %127 = arith.negf %126 : vector<8x128xf32>
    %128 = math.exp %127 : vector<8x128xf32>
    %cst_84 = arith.constant 1.000000e+00 : f32
    %129 = vector.broadcast %cst_84 : f32 to vector<8x128xf32>
    %130 = arith.addf %129, %128 : vector<8x128xf32>
    %131 = arith.divf %129, %130 : vector<8x128xf32>
    %132 = arith.mulf %126, %131 : vector<8x128xf32>
    %c0_85 = arith.constant 0 : index
    %c0_86 = arith.constant 0 : index
    %133 = vector.load %arg7[%c0_85, %c0_86] : memref<8x128xf32, #tpu.memory_space<vmem>>, vector<8x128xf32>
    tpu.vector_store %arg7[%c0_85, %c0_86], %132 {strides = array<i32>} : memref<8x128xf32, #tpu.memory_space<vmem>>, vector<8x128xf32>,
    return
  }
}

</mosaic_0001>

<llo_original>
// kernel: tpu_custom_call.1
$region0: #{tpu_custom_call.1}
  #allocation0 [shape = 'u32[]', space=smem, size = 0x4, offset = 0x4, fixed_abs, tag = 'smem constant byte address 0x4 - core index']
  #allocation1 [shape = 'u32[72,128]{1,0:T(1,128)}', space=vmem, size = 0x9000, scoped, tag = 'internal scratch']
  #allocation2 [shape = 'f32[8,128]{1,0:T(8,128)}', space=vmem, size = 0x1000, scoped, tag = 'scratch operand']
  #allocation3 [shape = 's32[8]{0}', space=sflag, size = 0x20, scoped, tag = 'scratch operand']
  #allocation13 [shape = 's32[]', space=sflag, size = 0x4, offset = 0, fixed_abs, tag = 'sflag constant byte address 0x0 - dummy sync flag']
  #allocation14 [shape = 's32[]', space=sflag, size = 0x4, offset = 0, fixed_abs, tag = 'sflag constant byte address 0x0 - dummy sync flag']
  #allocation15 [shape = 'u32[]', space=smem, size = 0x4, offset = 0x44, fixed_abs, tag = 'smem constant byte address 0x44 - assertion arg 0']
  #allocation16 [shape = 'u32[]', space=smem, size = 0x4, offset = 0x48, fixed_abs, tag = 'smem constant byte address 0x48 - assertion arg 1']
  #allocation17 [shape = 's32[]', space=sflag, size = 0x4, offset = 0, fixed_abs, tag = 'sflag constant byte address 0x0 - dummy sync flag']
  #allocation18 [shape = 's32[]', space=sflag, size = 0x4, offset = 0, fixed_abs, tag = 'sflag constant byte address 0x0 - dummy sync flag']
  #allocation19 [shape = 's32[]', space=sflag, size = 0x4, offset = 0, fixed_abs, tag = 'sflag constant byte address 0x0 - dummy sync flag']
  #allocation20 [shape = 's32[]', space=sflag, size = 0x4, offset = 0, fixed_abs, tag = 'sflag constant byte address 0x0 - dummy sync flag']
  #allocation21 [shape = 's32[]', space=sflag, size = 0x4, offset = 0, fixed_abs, tag = 'sflag constant byte address 0x0 - dummy sync flag']
  #allocation22 [shape = 's32[]', space=sflag, size = 0x4, offset = 0, fixed_abs, tag = 'sflag constant byte address 0x0 - dummy sync flag']
  #allocation23 [shape = 's32[]', space=sflag, size = 0x4, offset = 0, fixed_abs, tag = 'sflag constant byte address 0x0 - dummy sync flag']
  #allocation24 [shape = 's32[]', space=sflag, size = 0x4, offset = 0, fixed_abs, tag = 'sflag constant byte address 0x0 - dummy sync flag']
  #allocation25 [shape = 's32[]', space=sflag, size = 0x4, offset = 0, fixed_abs, tag = 'sflag constant byte address 0x0 - dummy sync flag']
  #allocation26 [shape = 's32[]', space=sflag, size = 0x4, offset = 0, fixed_abs, tag = 'sflag constant byte address 0x0 - dummy sync flag']
  #allocation27 [shape = 's32[]', space=sflag, size = 0x4, offset = 0, fixed_abs, tag = 'sflag constant byte address 0x0 - dummy sync flag']
  #allocation28 [shape = 's32[]', space=sflag, size = 0x4, offset = 0, fixed_abs, tag = 'sflag constant byte address 0x0 - dummy sync flag']
  #allocation29 [shape = 's32[]', space=sflag, size = 0x4, offset = 0, fixed_abs, tag = 'sflag constant byte address 0x0 - dummy sync flag']
  #allocation30 [shape = 's32[]', space=sflag, size = 0x4, offset = 0, fixed_abs, tag = 'sflag constant byte address 0x0 - dummy sync flag']
  %s0 = inlined_call_operand.hbm [shape: s32[8], index: 0, kind: input, shape index: {}]
  %s1 = inlined_call_operand.hbm [shape: f32[8,64], index: 1, kind: input, shape index: {}]
  %s2 = inlined_call_operand.hbm [shape: f32[1000,128], index: 2, kind: input, shape index: {}]
  %s3 = inlined_call_operand.hbm [shape: bf16[64,256], index: 3, kind: input, shape index: {}]
  %s4 = inlined_call_operand.vmem [shape: f32[1,128], index: 4, kind: input, shape index: {}]
  %s5 = inlined_call_operand.hbm [shape: bf16[128,256], index: 5, kind: input, shape index: {}]
  %s6 = inlined_call_operand.vmem [shape: f32[1,256], index: 6, kind: input, shape index: {}]
  %s7 = inlined_call_operand.hbm [shape: f32[8,128], index: 7, kind: output, shape index: {}]
  %s8 = sld [smem:[#allocation0]]
  $region82: #{tpu_custom_call.1} parent=0
    _
  %s10 = ssub.s32 1, %s8
  %s11 = scalar_select 0, %s10, %s8
  $region1: #{tpu_custom_call.1} parent=0
    #allocation4 [shape = 'u8[512]{0}', space=smem, size = 0x200, scoped, tag = 'input window, operand 0, single buffered']
    #allocation5 [shape = 's32[1]{0}', space=sflag, size = 0x4, scoped, tag = 'scoped memory for tpu_custom_call.1']
    #allocation6 [shape = 's32[1]{0}', space=sflag, size = 0x4, scoped, tag = 'scoped memory for tpu_custom_call.1']
    #allocation7 [shape = 's32[1]{0}', space=sflag, size = 0x4, scoped, tag = 'scoped memory for tpu_custom_call.1']
    #allocation8 [shape = 'u8[4096]{0}', space=vmem, size = 0x1000, scoped, tag = 'input window, operand 1, single buffered']
    #allocation9 [shape = 'u8[32768]{0}', space=vmem, size = 0x8000, scoped, tag = 'input window, operand 3, single buffered']
    #allocation10 [shape = 's32[1]{0}', space=sflag, size = 0x4, scoped, tag = 'scoped memory for tpu_custom_call.1']
    #allocation11 [shape = 'u8[65536]{0}', space=vmem, size = 0x10000, scoped, tag = 'input window, operand 5, single buffered']
    #allocation12 [shape = 'u8[4096]{0}', space=vmem, size = 0x1000, scoped, tag = 'output window, operand 0, single buffered']
    %12 = vsyncpa [#allocation7], 0
    %13 = vsyncpa [#allocation5], 0
    %14 = vsyncpa [#allocation10], 0
    %15 = vsyncpa [#allocation6], 0
    // Predicated region
    $region2: #{tpu_custom_call.1} parent=1 // pred_check
      _
    $region3: #{tpu_custom_call.1} parent=1 // pred_check_branch
      %17 = sbr.rel (0) target = $region5
    $region4: #{tpu_custom_call.1} parent=1 // pred_region
      %19 = vsyncadd [#allocation7], 0
      %s21 = sshll.u32 %s0, 4
      %s22 = int_to_ptr.hbm [resolvable:$true] %s21
      %24 = dma.hbm_to_smem %s22, 16, [#allocation4], [#allocation7]
    $region5: #{tpu_custom_call.1} parent=1 // pred_fallthru
      _
    // Predicated region
    $region6: #{tpu_custom_call.1} parent=1 // pred_check
      _
    $region7: #{tpu_custom_call.1} parent=1 // pred_check_branch
      %26 = sbr.rel (0) target = $region9
    $region8: #{tpu_custom_call.1} parent=1 // pred_region
      %28 = vsyncadd [#allocation5], 0
      %s30 = sshll.u32 %s1, 4
      %s31 = int_to_ptr.hbm [resolvable:$true] %s30
      %s32 = sshll.u32 [#allocation8], 4
      %s33 = int_to_ptr.vmem [resolvable:$true] %s32
      %35 = dma.hbm_to_vmem [thread:$0]  %s31, 128, %s33, [#allocation5]
    $region9: #{tpu_custom_call.1} parent=1 // pred_fallthru
      _
    // Predicated region
    $region10: #{tpu_custom_call.1} parent=1 // pred_check
      _
    $region11: #{tpu_custom_call.1} parent=1 // pred_check_branch
      %37 = sbr.rel (0) target = $region13
    $region12: #{tpu_custom_call.1} parent=1 // pred_region
      %39 = vsyncadd [#allocation10], 0
      %s40 = sshll.u32 %s3, 4
      %s41 = int_to_ptr.hbm [resolvable:$true] %s40
      %s42 = sshll.u32 [#allocation9], 4
      %s43 = int_to_ptr.vmem [resolvable:$true] %s42
      %48 = dma.hbm_to_vmem [thread:$0]  %s41, 1024, %s43, [#allocation10], 128, 128, 8
    $region13: #{tpu_custom_call.1} parent=1 // pred_fallthru
      _
    // Predicated region
    $region14: #{tpu_custom_call.1} parent=1 // pred_check
      _
    $region15: #{tpu_custom_call.1} parent=1 // pred_check_branch
      %50 = sbr.rel (0) target = $region17
    $region16: #{tpu_custom_call.1} parent=1 // pred_region
      _
    $region17: #{tpu_custom_call.1} parent=1 // pred_fallthru
      _
    // Predicated region
    $region18: #{tpu_custom_call.1} parent=1 // pred_check
      _
    $region19: #{tpu_custom_call.1} parent=1 // pred_check_branch
      %52 = sbr.rel (0) target = $region21
    $region20: #{tpu_custom_call.1} parent=1 // pred_region
      %54 = vsyncadd [#allocation10], 0
      %s55 = sshll.u32 %s5, 4
      %s56 = int_to_ptr.hbm [resolvable:$true] %s55
      %s57 = sshll.u32 [#allocation11], 4
      %s58 = int_to_ptr.vmem [resolvable:$true] %s57
      %63 = dma.hbm_to_vmem [thread:$0]  %s56, 2048, %s58, [#allocation10], 128, 128, 8
    $region21: #{tpu_custom_call.1} parent=1 // pred_fallthru
      _
    // Predicated region
    $region22: #{tpu_custom_call.1} parent=1 // pred_check
      _
    $region23: #{tpu_custom_call.1} parent=1 // pred_check_branch
      %65 = sbr.rel (0) target = $region25
    $region24: #{tpu_custom_call.1} parent=1 // pred_region
      _
    $region25: #{tpu_custom_call.1} parent=1 // pred_fallthru
      _
    // Predicated region
    $region26: #{tpu_custom_call.1} parent=1 // pred_check
      _
    $region27: #{tpu_custom_call.1} parent=1 // pred_check_branch
      %67 = sbr.rel (0) target = $region29
    $region28: #{tpu_custom_call.1} parent=1 // pred_region
      %69 = dma.done [#allocation7], 16
    $region29: #{tpu_custom_call.1} parent=1 // pred_fallthru
      _
    // Predicated region
    $region30: #{tpu_custom_call.1} parent=1 // pred_check
      _
    $region31: #{tpu_custom_call.1} parent=1 // pred_check_branch
      %71 = sbr.rel (0) target = $region33
    $region32: #{tpu_custom_call.1} parent=1 // pred_region
      %73 = dma.done [#allocation5], 128
    $region33: #{tpu_custom_call.1} parent=1 // pred_fallthru
      _
    // Predicated region
    $region34: #{tpu_custom_call.1} parent=1 // pred_check
      _
    $region35: #{tpu_custom_call.1} parent=1 // pred_check_branch
      %75 = sbr.rel (0) target = $region37
    $region36: #{tpu_custom_call.1} parent=1 // pred_region
      %77 = dma.done [#allocation10], 1024
    $region37: #{tpu_custom_call.1} parent=1 // pred_fallthru
      _
    // Predicated region
    $region38: #{tpu_custom_call.1} parent=1 // pred_check
      _
    $region39: #{tpu_custom_call.1} parent=1 // pred_check_branch
      %79 = sbr.rel (0) target = $region41
    $region40: #{tpu_custom_call.1} parent=1 // pred_region
      %81 = dma.done [#allocation10], 2048
    $region41: #{tpu_custom_call.1} parent=1 // pred_fallthru
      _
    %82 = sfence
    %s84 = sld [smem:[#allocation4]]
    %s85 = scalar_lea.hbm %s2, %s84
    // Predicated region
    $region42: #{tpu_custom_call.1} parent=1 // pred_check
      _
    $region43: #{tpu_custom_call.1} parent=1 // pred_check_branch
      %87 = sbr.rel target = $region45
    $region44: #{tpu_custom_call.1} parent=1 // pred_region
      %88 = sst [smem:[#allocation15]] [#allocation14]
      %89 = sst [smem:[#allocation16]] [#allocation13]
    $region45: #{tpu_custom_call.1} parent=1 // pred_fallthru
      _
    %91 = shalt.err (0)
    %s93 = sshll.u32 %s85, 4
    %s94 = int_to_ptr.hbm [resolvable:$true] %s93
    %s95 = sshll.u32 [#allocation2], 4
    %s96 = int_to_ptr.vmem [resolvable:$true] %s95
    %98 = dma.hbm_to_vmem [thread:$0]  %s94, 16, %s96, [#allocation3]
    %s99 = sld [smem:[#allocation4 + $0x1]]
    %s100 = scalar_lea.hbm %s2, %s99
    %s101 = scalar_lea.vmem [#allocation2], 1
    %s102 = scalar_lea.sflag [#allocation3], 1
    // Predicated region
    $region46: #{tpu_custom_call.1} parent=1 // pred_check
      _
    $region47: #{tpu_custom_call.1} parent=1 // pred_check_branch
      %104 = sbr.rel target = $region49
    $region48: #{tpu_custom_call.1} parent=1 // pred_region
      %105 = sst [smem:[#allocation15]] [#allocation18]
      %106 = sst [smem:[#allocation16]] [#allocation17]
    $region49: #{tpu_custom_call.1} parent=1 // pred_fallthru
      _
    %108 = shalt.err (0)
    %s110 = sshll.u32 %s100, 4
    %s111 = int_to_ptr.hbm [resolvable:$true] %s110
    %s112 = sshll.u32 %s101, 4
    %s113 = int_to_ptr.vmem [resolvable:$true] %s112
    %115 = dma.hbm_to_vmem [thread:$0]  %s111, 16, %s113, %s102
    %s116 = sld [smem:[#allocation4 + $0x2]]
    %s117 = scalar_lea.hbm %s2, %s116
    %s118 = scalar_lea.vmem [#allocation2], 2
    %s119 = scalar_lea.sflag [#allocation3], 2
    // Predicated region
    $region50: #{tpu_custom_call.1} parent=1 // pred_check
      _
    $region51: #{tpu_custom_call.1} parent=1 // pred_check_branch
      %121 = sbr.rel target = $region53
    $region52: #{tpu_custom_call.1} parent=1 // pred_region
      %122 = sst [smem:[#allocation15]] [#allocation20]
      %123 = sst [smem:[#allocation16]] [#allocation19]
    $region53: #{tpu_custom_call.1} parent=1 // pred_fallthru
      _
    %125 = shalt.err (0)
    %s127 = sshll.u32 %s117, 4
    %s128 = int_to_ptr.hbm [resolvable:$true] %s127
    %s129 = sshll.u32 %s118, 4
    %s130 = int_to_ptr.vmem [resolvable:$true] %s129
    %132 = dma.hbm_to_vmem [thread:$0]  %s128, 16, %s130, %s119
    %s133 = sld [smem:[#allocation4 + $0x3]]
    %s134 = scalar_lea.hbm %s2, %s133
    %s135 = scalar_lea.vmem [#allocation2], 3
    %s136 = scalar_lea.sflag [#allocation3], 3
    // Predicated region
    $region54: #{tpu_custom_call.1} parent=1 // pred_check
      _
    $region55: #{tpu_custom_call.1} parent=1 // pred_check_branch
      %138 = sbr.rel target = $region57
    $region56: #{tpu_custom_call.1} parent=1 // pred_region
      %139 = sst [smem:[#allocation15]] [#allocation22]
      %140 = sst [smem:[#allocation16]] [#allocation21]
    $region57: #{tpu_custom_call.1} parent=1 // pred_fallthru
      _
    %142 = shalt.err (0)
    %s144 = sshll.u32 %s134, 4
    %s145 = int_to_ptr.hbm [resolvable:$true] %s144
    %s146 = sshll.u32 %s135, 4
    %s147 = int_to_ptr.vmem [resolvable:$true] %s146
    %149 = dma.hbm_to_vmem [thread:$0]  %s145, 16, %s147, %s136
    %s150 = sld [smem:[#allocation4 + $0x4]]
    %s151 = scalar_lea.hbm %s2, %s150
    %s152 = scalar_lea.vmem [#allocation2], 4
    %s153 = scalar_lea.sflag [#allocation3], 4
    // Predicated region
    $region58: #{tpu_custom_call.1} parent=1 // pred_check
      _
    $region59: #{tpu_custom_call.1} parent=1 // pred_check_branch
      %155 = sbr.rel target = $region61
    $region60: #{tpu_custom_call.1} parent=1 // pred_region
      %156 = sst [smem:[#allocation15]] [#allocation24]
      %157 = sst [smem:[#allocation16]] [#allocation23]
    $region61: #{tpu_custom_call.1} parent=1 // pred_fallthru
      _
    %159 = shalt.err (0)
    %s161 = sshll.u32 %s151, 4
    %s162 = int_to_ptr.hbm [resolvable:$true] %s161
    %s163 = sshll.u32 %s152, 4
    %s164 = int_to_ptr.vmem [resolvable:$true] %s163
    %166 = dma.hbm_to_vmem [thread:$0]  %s162, 16, %s164, %s153
    %s167 = sld [smem:[#allocation4 + $0x5]]
    %s168 = scalar_lea.hbm %s2, %s167
    %s169 = scalar_lea.vmem [#allocation2], 5
    %s170 = scalar_lea.sflag [#allocation3], 5
    // Predicated region
    $region62: #{tpu_custom_call.1} parent=1 // pred_check
      _
    $region63: #{tpu_custom_call.1} parent=1 // pred_check_branch
      %172 = sbr.rel target = $region65
    $region64: #{tpu_custom_call.1} parent=1 // pred_region
      %173 = sst [smem:[#allocation15]] [#allocation26]
      %174 = sst [smem:[#allocation16]] [#allocation25]
    $region65: #{tpu_custom_call.1} parent=1 // pred_fallthru
      _
    %176 = shalt.err (0)
    %s178 = sshll.u32 %s168, 4
    %s179 = int_to_ptr.hbm [resolvable:$true] %s178
    %s180 = sshll.u32 %s169, 4
    %s181 = int_to_ptr.vmem [resolvable:$true] %s180
    %183 = dma.hbm_to_vmem [thread:$0]  %s179, 16, %s181, %s170
    %s184 = sld [smem:[#allocation4 + $0x6]]
    %s185 = scalar_lea.hbm %s2, %s184
    %s186 = scalar_lea.vmem [#allocation2], 6
    %s187 = scalar_lea.sflag [#allocation3], 6
    // Predicated region
    $region66: #{tpu_custom_call.1} parent=1 // pred_check
      _
    $region67: #{tpu_custom_call.1} parent=1 // pred_check_branch
      %189 = sbr.rel target = $region69
    $region68: #{tpu_custom_call.1} parent=1 // pred_region
      %190 = sst [smem:[#allocation15]] [#allocation28]
      %191 = sst [smem:[#allocation16]] [#allocation27]
    $region69: #{tpu_custom_call.1} parent=1 // pred_fallthru
      _
    %193 = shalt.err (0)
    %s195 = sshll.u32 %s185, 4
    %s196 = int_to_ptr.hbm [resolvable:$true] %s195
    %s197 = sshll.u32 %s186, 4
    %s198 = int_to_ptr.vmem [resolvable:$true] %s197
    %200 = dma.hbm_to_vmem [thread:$0]  %s196, 16, %s198, %s187
    %s201 = sld [smem:[#allocation4 + $0x7]]
    %s202 = scalar_lea.hbm %s2, %s201
    %s203 = scalar_lea.vmem [#allocation2], 7
    %s204 = scalar_lea.sflag [#allocation3], 7
    // Predicated region
    $region70: #{tpu_custom_call.1} parent=1 // pred_check
      _
    $region71: #{tpu_custom_call.1} parent=1 // pred_check_branch
      %206 = sbr.rel target = $region73
    $region72: #{tpu_custom_call.1} parent=1 // pred_region
      %207 = sst [smem:[#allocation15]] [#allocation30]
      %208 = sst [smem:[#allocation16]] [#allocation29]
    $region73: #{tpu_custom_call.1} parent=1 // pred_fallthru
      _
    %210 = shalt.err (0)
    %s212 = sshll.u32 %s202, 4
    %s213 = int_to_ptr.hbm [resolvable:$true] %s212
    %s214 = sshll.u32 %s203, 4
    %s215 = int_to_ptr.vmem [resolvable:$true] %s214
    %217 = dma.hbm_to_vmem [thread:$0]  %s213, 16, %s215, %s204
    %v218 = vld [vmem:[#allocation8] sm:$0xff]
    %v219 = vpack.c.bf16 %v218, %v218
    %v220 = vld [vmem:[#allocation9] sm:$0xff]
    %v221 = vld [vmem:[#allocation9 + $0x8] sm:$0xff]
    %v222 = vld [vmem:[#allocation9 + $0x10] sm:$0xff]
    %v223 = vld [vmem:[#allocation9 + $0x18] sm:$0xff]
    %v224 = vld [vmem:[#allocation9 + $0x20] sm:$0xff]
    %v225 = vld [vmem:[#allocation9 + $0x28] sm:$0xff]
    %v226 = vld [vmem:[#allocation9 + $0x30] sm:$0xff]
    %v227 = vld [vmem:[#allocation9 + $0x38] sm:$0xff]
    %v236 = vunpack.c.l.b16 %v220
    %v237 = vunpack.c.h.b16 %v220
    %v238 = vunpack.c.l.b16 %v221
    %v239 = vunpack.c.h.b16 %v221
    %v240 = vunpack.c.l.b16 %v222
    %v241 = vunpack.c.h.b16 %v222
    %v242 = vunpack.c.l.b16 %v223
    %v243 = vunpack.c.h.b16 %v223
    %v244 = vunpack.c.l.b16 %v224
    %v245 = vunpack.c.h.b16 %v224
    %v246 = vunpack.c.l.b16 %v225
    %v247 = vunpack.c.h.b16 %v225
    %v248 = vunpack.c.l.b16 %v226
    %v249 = vunpack.c.h.b16 %v226
    %v250 = vunpack.c.l.b16 %v227
    %v251 = vunpack.c.h.b16 %v227
    %v252 = vpack.c.b16 %v238, %v236
    %v253 = vpack.c.b16 %v239, %v237
    %v254 = vpack.c.b16 %v242, %v240
    %v255 = vpack.c.b16 %v243, %v241
    %v256 = vpack.c.b16 %v246, %v244
    %v257 = vpack.c.b16 %v247, %v245
    %v258 = vpack.c.b16 %v250, %v248
    %v259 = vpack.c.b16 %v251, %v249
    %vm268 = vcmask 523264
    %v270 = vsel %vm268, %v219, 0
    %272 = vmatpush.bf16.msra.mxu0 0
    %273 = vmatpush.bf16.msra.mxu0 0
    %274 = vmatpush.bf16.msra.mxu0 0
    %275 = vmatpush.bf16.msra.mxu0 0
    %276 = vmatpush.bf16.msra.mxu0 %v258
    %277 = vmatpush.bf16.msra.mxu0 %v256
    %278 = vmatpush.bf16.msra.mxu0 %v254
    %279 = vmatpush.bf16.msra.mxu0 %v252
    %280 = vmatmul.bf16.gmra.mxu0 %v270
    %v281 = vpop.f32.mrf.mxu0
    %v282 = vadd.f32 0.0, %v281
    %v283 = vpop.f32.mrf.mxu0
    %284 = vdwg.mxu0
    %285 = vmatpush.bf16.msra.mxu0 0
    %286 = vmatpush.bf16.msra.mxu0 0
    %287 = vmatpush.bf16.msra.mxu0 0
    %288 = vmatpush.bf16.msra.mxu0 0
    %289 = vmatpush.bf16.msra.mxu0 %v259
    %290 = vmatpush.bf16.msra.mxu0 %v257
    %291 = vmatpush.bf16.msra.mxu0 %v255
    %292 = vmatpush.bf16.msra.mxu0 %v253
    %293 = vmatmul.bf16.gmra.mxu0 %v270
    %v294 = vpop.f32.mrf.mxu0
    %v295 = vadd.f32 0.0, %v294
    %v296 = vpop.f32.mrf.mxu0
    %297 = vdwg.mxu0
    %v298 = vld [vmem:[%s4] sm:$0x1]
    %v300 = vperm.slane %v298, 0
    %v302 = vadd.f32 %v282, %v300
    %s303 = sld [smem:[#allocation4]]
    %s304 = smul.u32 1, 1
    %s305 = sshll.u32 %s304, 4
    %306 = dma.done [#allocation3], %s305
    %s307 = sld [smem:[#allocation4 + $0x1]]
    %s308 = sshll.u32 %s304, 4
    %309 = dma.done %s102, %s308
    %s310 = sld [smem:[#allocation4 + $0x2]]
    %s311 = sshll.u32 %s304, 4
    %312 = dma.done %s119, %s311
    %s313 = sld [smem:[#allocation4 + $0x3]]
    %s314 = sshll.u32 %s304, 4
    %315 = dma.done %s136, %s314
    %s316 = sld [smem:[#allocation4 + $0x4]]
    %s317 = sshll.u32 %s304, 4
    %318 = dma.done %s153, %s317
    %s319 = sld [smem:[#allocation4 + $0x5]]
    %s320 = sshll.u32 %s304, 4
    %321 = dma.done %s170, %s320
    %s322 = sld [smem:[#allocation4 + $0x6]]
    %s323 = sshll.u32 %s304, 4
    %324 = dma.done %s187, %s323
    %s325 = sld [smem:[#allocation4 + $0x7]]
    %s326 = sshll.u32 %s304, 4
    %327 = dma.done %s204, %s326
    %v328 = vld [vmem:[#allocation2] sm:$0xff]
    %v329 = vxor.u32 %v328, 2147483648
    %v330 = vmul.f32 %v329, 1.442695
    %v331 = vpow.pop %v330
    %v332 = vadd.f32 %v331, 1.0
    %v333 = vrcp.pop %v332
    %v334 = vmul.f32 %v332, %v333
    %v335 = vsub.f32 1.0, %v334
    %v336 = vmul.f32 %v333, %v335
    %v337 = vadd.f32 %v333, %v336
    %vm338 = vweird.f32 %v332
    %vm339 = vweird.f32 %v333
    %vm340 = vmor %vm338, %vm339
    %v341 = vsel %vm340, %v333, %v337
    %v342 = vand.u32 2147483647, %v332
    %vm343 = vcmp.eq.f32.partialorder %v342, 8.507059e+37
    %v344 = vand.u32 %v332, 2147483648
    %v345 = vor.u32 1.1754944e-38, %v344
    %v346 = vsel %vm343, %v345, %v341
    %v347 = vmul.f32 1.0, %v346
    %v348 = vmul.f32 %v328, %v347
    %v349 = vpack.c.bf16 %v348, %v348
    %v350 = vld [vmem:[#allocation11] sm:$0xff]
    %v351 = vld [vmem:[#allocation11 + $0x8] sm:$0xff]
    %v352 = vld [vmem:[#allocation11 + $0x10] sm:$0xff]
    %v353 = vld [vmem:[#allocation11 + $0x18] sm:$0xff]
    %v354 = vld [vmem:[#allocation11 + $0x20] sm:$0xff]
    %v355 = vld [vmem:[#allocation11 + $0x28] sm:$0xff]
    %v356 = vld [vmem:[#allocation11 + $0x30] sm:$0xff]
    %v357 = vld [vmem:[#allocation11 + $0x38] sm:$0xff]
    %v358 = vld [vmem:[#allocation11 + $0x40] sm:$0xff]
    %v359 = vld [vmem:[#allocation11 + $0x48] sm:$0xff]
    %v360 = vld [vmem:[#allocation11 + $0x50] sm:$0xff]
    %v361 = vld [vmem:[#allocation11 + $0x58] sm:$0xff]
    %v362 = vld [vmem:[#allocation11 + $0x60] sm:$0xff]
    %v363 = vld [vmem:[#allocation11 + $0x68] sm:$0xff]
    %v364 = vld [vmem:[#allocation11 + $0x70] sm:$0xff]
    %v365 = vld [vmem:[#allocation11 + $0x78] sm:$0xff]
    %v366 = vld [vmem:[%s6] sm:$0x3]
    %v368 = vperm.slane %v366, 0
    %v369 = vperm.slane %v366, 1
    %v388 = vunpack.c.l.b16 %v350
    %v389 = vunpack.c.h.b16 %v350
    %v390 = vunpack.c.l.b16 %v351
    %v391 = vunpack.c.h.b16 %v351
    %v392 = vunpack.c.l.b16 %v352
    %v393 = vunpack.c.h.b16 %v352
    %v394 = vunpack.c.l.b16 %v353
    %v395 = vunpack.c.h.b16 %v353
    %v396 = vunpack.c.l.b16 %v354
    %v397 = vunpack.c.h.b16 %v354
    %v398 = vunpack.c.l.b16 %v355
    %v399 = vunpack.c.h.b16 %v355
    %v400 = vunpack.c.l.b16 %v356
    %v401 = vunpack.c.h.b16 %v356
    %v402 = vunpack.c.l.b16 %v357
    %v403 = vunpack.c.h.b16 %v357
    %v404 = vunpack.c.l.b16 %v358
    %v405 = vunpack.c.h.b16 %v358
    %v406 = vunpack.c.l.b16 %v359
    %v407 = vunpack.c.h.b16 %v359
    %v408 = vunpack.c.l.b16 %v360
    %v409 = vunpack.c.h.b16 %v360
    %v410 = vunpack.c.l.b16 %v361
    %v411 = vunpack.c.h.b16 %v361
    %v412 = vunpack.c.l.b16 %v362
    %v413 = vunpack.c.h.b16 %v362
    %v414 = vunpack.c.l.b16 %v363
    %v415 = vunpack.c.h.b16 %v363
    %v416 = vunpack.c.l.b16 %v364
    %v417 = vunpack.c.h.b16 %v364
    %v418 = vunpack.c.l.b16 %v365
    %v419 = vunpack.c.h.b16 %v365
    %v420 = vpack.c.b16 %v390, %v388
    %v421 = vpack.c.b16 %v391, %v389
    %v422 = vpack.c.b16 %v394, %v392
    %v423 = vpack.c.b16 %v395, %v393
    %v424 = vpack.c.b16 %v398, %v396
    %v425 = vpack.c.b16 %v399, %v397
    %v426 = vpack.c.b16 %v402, %v400
    %v427 = vpack.c.b16 %v403, %v401
    %v428 = vpack.c.b16 %v406, %v404
    %v429 = vpack.c.b16 %v407, %v405
    %v430 = vpack.c.b16 %v410, %v408
    %v431 = vpack.c.b16 %v411, %v409
    %v432 = vpack.c.b16 %v414, %v412
    %v433 = vpack.c.b16 %v415, %v413
    %v434 = vpack.c.b16 %v418, %v416
    %v435 = vpack.c.b16 %v419, %v417
    %452 = vmatpush.bf16.msra.mxu0 %v434
    %453 = vmatpush.bf16.msra.mxu0 %v432
    %454 = vmatpush.bf16.msra.mxu0 %v430
    %455 = vmatpush.bf16.msra.mxu0 %v428
    %456 = vmatpush.bf16.msra.mxu0 %v426
    %457 = vmatpush.bf16.msra.mxu0 %v424
    %458 = vmatpush.bf16.msra.mxu0 %v422
    %459 = vmatpush.bf16.msra.mxu0 %v420
    %460 = vmatmul.bf16.gmra.mxu0 %v349
    %v461 = vpop.f32.mrf.mxu0
    %v462 = vadd.f32 %v368, %v461
    %v463 = vpop.f32.mrf.mxu0
    %464 = vdwg.mxu0
    %465 = vmatpush.bf16.msra.mxu0 %v435
    %466 = vmatpush.bf16.msra.mxu0 %v433
    %467 = vmatpush.bf16.msra.mxu0 %v431
    %468 = vmatpush.bf16.msra.mxu0 %v429
    %469 = vmatpush.bf16.msra.mxu0 %v427
    %470 = vmatpush.bf16.msra.mxu0 %v425
    %471 = vmatpush.bf16.msra.mxu0 %v423
    %472 = vmatpush.bf16.msra.mxu0 %v421
    %473 = vmatmul.bf16.gmra.mxu0 %v349
    %v474 = vpop.f32.mrf.mxu0
    %v475 = vadd.f32 %v369, %v474
    %v476 = vpop.f32.mrf.mxu0
    %477 = vdwg.mxu0
    %478 = vadd.xlane.f32.xlu0 %v302
    %v479 = vpop.xlane.xlu0 %478
    %v480 = vrcp.pop 128.0
    %v481 = vmul.f32 128.0, %v480
    %v482 = vsub.f32 1.0, %v481
    %v483 = vmul.f32 %v480, %v482
    %v484 = vadd.f32 %v480, %v483
    %vm485 = vweird.f32 %v480
    %v486 = vsel %vm485, %v480, %v484
    %v487 = vmul.f32 %v479, %v486
    %v488 = vsub.f32 %v302, %v487
    %v489 = vmul.f32 %v488, %v488
    %490 = vadd.xlane.f32.xlu0 %v489
    %v491 = vpop.xlane.xlu0 %490
    %v492 = vmul.f32 %v491, %v486
    %v493 = vadd.f32 %v492, 1e-05
    %v494 = vrsqrt.pop %v493
    %v495 = vmul.f32 %v494, %v493
    %v496 = vmul.f32 %v495, %v494
    %v497 = vmul.f32 0.5, %v496
    %v498 = vsub.f32 1.5, %v497
    %v499 = vmul.f32 %v494, %v498
    %vm500 = vweird.f32 %v493
    %vm501 = vweird.f32 %v494
    %vm502 = vmor %vm500, %vm501
    %v503 = vsel %vm502, %v494, %v499
    %v504 = vmul.f32 %v488, %v503
    %v505 = vadd.f32 %v462, 1.0
    %v506 = vmul.f32 %v504, %v505
    %v507 = vadd.f32 %v506, %v475
    %v508 = vadd.f32 %v507, %v295
    %v509 = vxor.u32 %v508, 2147483648
    %v510 = vmul.f32 %v509, 1.442695
    %v511 = vpow.pop %v510
    %v512 = vadd.f32 %v511, 1.0
    %v513 = vrcp.pop %v512
    %v514 = vmul.f32 %v512, %v513
    %v515 = vsub.f32 1.0, %v514
    %v516 = vmul.f32 %v513, %v515
    %v517 = vadd.f32 %v513, %v516
    %vm518 = vweird.f32 %v512
    %vm519 = vweird.f32 %v513
    %vm520 = vmor %vm518, %vm519
    %v521 = vsel %vm520, %v513, %v517
    %v522 = vand.u32 2147483647, %v512
    %vm523 = vcmp.eq.f32.partialorder %v522, 8.507059e+37
    %v524 = vand.u32 %v512, 2147483648
    %v525 = vor.u32 1.1754944e-38, %v524
    %v526 = vsel %vm523, %v525, %v521
    %v527 = vmul.f32 1.0, %v526
    %v528 = vmul.f32 %v508, %v527
    %529 = vst [vmem:[#allocation12] sm:$0xff] %v528
    // Predicated region
    $region74: #{tpu_custom_call.1} parent=1 // pred_check
      _
    $region75: #{tpu_custom_call.1} parent=1 // pred_check_branch
      %531 = sbr.rel (0) target = $region77
    $region76: #{tpu_custom_call.1} parent=1 // pred_region
      %533 = vsyncadd [#allocation6], 0
      %s535 = sshll.u32 [#allocation12], 4
      %s536 = int_to_ptr.vmem [resolvable:$true] %s535
      %s537 = sshll.u32 %s7, 4
      %s538 = int_to_ptr.hbm [resolvable:$true] %s537
      %540 = dma.vmem_to_hbm [thread:$0]  %s536, 128, %s538, [#allocation6]
    $region77: #{tpu_custom_call.1} parent=1 // pred_fallthru
      _
    // Predicated region
    $region78: #{tpu_custom_call.1} parent=1 // pred_check
      _
    $region79: #{tpu_custom_call.1} parent=1 // pred_check_branch
      %542 = sbr.rel (0) target = $region81
    $region80: #{tpu_custom_call.1} parent=1 // pred_region
      %544 = dma.done [#allocation6], 128
    $region81: #{tpu_custom_call.1} parent=1 // pred_fallthru
      _
    %545 = vsyncpa [#allocation5], 1
    %546 = vsyncpa [#allocation10], 1
    %547 = vsyncpa [#allocation6], 1
    %548 = vsyncpa [#allocation7], 1
  %549 = vsyncmov [#allocation3]
  %s550 = vpop.sfrf %549
  %p551 = scmp.eq.s32.totalorder %s550, 0
  %p552 = pneg %p551
  %554 = shalt.err (%p552)
  %s555 = scalar_lea.sflag [#allocation3], 1
  %556 = vsyncmov %s555
  %s557 = vpop.sfrf %556
  %p558 = scmp.eq.s32.totalorder %s557, 0
  %p559 = pneg %p558
  %561 = shalt.err (%p559)
  %s562 = scalar_lea.sflag [#allocation3], 2
  %563 = vsyncmov %s562
  %s564 = vpop.sfrf %563
  %p565 = scmp.eq.s32.totalorder %s564, 0
  %p566 = pneg %p565
  %568 = shalt.err (%p566)
  %s569 = scalar_lea.sflag [#allocation3], 3
  %570 = vsyncmov %s569
  %s571 = vpop.sfrf %570
  %p572 = scmp.eq.s32.totalorder %s571, 0
  %p573 = pneg %p572
  %575 = shalt.err (%p573)
  %s576 = scalar_lea.sflag [#allocation3], 4
  %577 = vsyncmov %s576
  %s578 = vpop.sfrf %577
  %p579 = scmp.eq.s32.totalorder %s578, 0
  %p580 = pneg %p579
  %582 = shalt.err (%p580)
  %s583 = scalar_lea.sflag [#allocation3], 5
  %584 = vsyncmov %s583
  %s585 = vpop.sfrf %584
  %p586 = scmp.eq.s32.totalorder %s585, 0
  %p587 = pneg %p586
  %589 = shalt.err (%p587)
  %s590 = scalar_lea.sflag [#allocation3], 6
  %591 = vsyncmov %s590
  %s592 = vpop.sfrf %591
  %p593 = scmp.eq.s32.totalorder %s592, 0
  %p594 = pneg %p593
  %596 = shalt.err (%p594)
  %s597 = scalar_lea.sflag [#allocation3], 7
  %598 = vsyncmov %s597
  %s599 = vpop.sfrf %598
  %p600 = scmp.eq.s32.totalorder %s599, 0
  %p601 = pneg %p600
  %603 = shalt.err (%p601)

</llo_original>
